<compile_context>
chip_gen: v5e
topology: v5e:2x2
jax: 0.10.0
libtpu: 0.0.40
codegen_flags: <defaults>
</compile_context>

<pallas_src>
import functools

import jax
import jax.numpy as jnp
from jax.experimental import pallas as pl
from jax.experimental.pallas import tpu as pltpu


def _round_up(x, m):
    return ((x + m - 1) // m) * m


def _vmem_budget_bytes():
    """~80% of physical VMEM: ~100 MiB on v5e/v6e, ~51 MiB on v7x."""
    try:
        cap = pltpu.get_tpu_info().vmem_capacity_bytes
    except Exception:
        cap = 64 * 1024 * 1024  # conservative fallback (v7x per-core VMEM)
    return int(cap * 0.8)


def _preferred_batch_tile():
    """v5e's MXU is 4x128x128, so 256-row LHS tiles buy nothing there."""
    try:
        kind = jax.devices()[0].device_kind.lower()
    except Exception:
        kind = ""
    return 128 if "v5" in kind else 256


def _choose_tiles(B, S, D_pad, O_pad, x_bytes, weight_bytes, budget, preferred_tb):
    """Largest (TB, tS) whose per-grid-step VMEM footprint fits `budget`."""
    s_full = _round_up(S, 8)
    if B <= preferred_tb:
        # Small batch: whole batch in one block, but give v7x's two TensorCores
        # (and the batch pipeline) at least two blocks when there is real work.
        tb = _round_up(-(-B // 2), 8) if B >= 16 else B
    else:
        tb = preferred_tb

    while True:
        fixed = (weight_bytes                       # resident weights (single buffer)
                 + 2 * 4 * tb * (O_pad + D_pad)     # double-buffered f32 outputs
                 + 4 * tb * D_pad)                  # f32 sum accumulator scratch
        per_row = 2 * tb * D_pad * x_bytes          # double-buffered x, per seq row
        avail = budget - fixed
        ts = 0 if avail <= 0 else min(s_full, (avail // per_row) // 8 * 8)
        if ts >= 8 or tb <= 8 or tb >= B:
            return int(tb), int(max(ts, 8))
        tb = max((tb // 2) // 8 * 8, 8)             # shrink the batch tile, retry


def _workspace_kernel(x_ref, w1_ref, b1_ref, w2_ref, b2_ref,
                      out_ref, xmean_ref, acc_ref, *, inv_s):
    j = pl.program_id(1)

    @pl.when(j == 0)
    def _():
        acc_ref[...] = jnp.zeros_like(acc_ref)

    # Partial sum over this sequence chunk (XLU reduce), accumulated in f32.
    x = x_ref[...].astype(jnp.float32)              # (TB, tS, D_pad)
    acc_ref[...] += jnp.sum(x, axis=1)              # (TB, D_pad)

    @pl.when(j == pl.num_programs(1) - 1)
    def _():
        x_mean = acc_ref[...] * inv_s               # sum * (1/S): one VPU mul
        xmean_ref[...] = x_mean.astype(xmean_ref.dtype)

        h = jnp.dot(x_mean, w1_ref[...],
                    preferred_element_type=jnp.float32) + b1_ref[...]
        h = jnp.maximum(h, 0.0)

        out = jnp.dot(h, w2_ref[...],
                      preferred_element_type=jnp.float32) + b2_ref[...]
        out_ref[...] = out.astype(out_ref.dtype)


def simple_workspace_forward(x, w1, b1, w2, b2, *, vmem_budget_bytes=None):
    """x: (B, S, D); w1: (D, H); b1: (1, H); w2: (H, O); b2: (1, O)."""
    B, S, D = x.shape
    H = w1.shape[1]
    O = w2.shape[1]

    # Lane-pad feature dims to multiples of 128 -> unmasked full-lane stores.
    D_pad, H_pad, O_pad = (_round_up(d, 128) for d in (D, H, O))

    budget = (vmem_budget_bytes if vmem_budget_bytes is not None
              else _vmem_budget_bytes())
    preferred_tb = _preferred_batch_tile()

    # Stream x as bf16 when it is large (the kernel is HBM-bandwidth bound on
    # x); accumulation / matmuls stay f32.  Small inputs stay f32 for parity.
    stream_bf16 = (B * S * D_pad * 4) > (32 * 1024 * 1024)
    x_bytes = 2 if stream_bf16 else 4

    # Resident weights/biases cost a single f32 buffer each (pl.Buffered(1)).
    weight_bytes = 4 * (D_pad * H_pad + H_pad + H_pad * O_pad + O_pad)

    TB, tS = _choose_tiles(B, S, D_pad, O_pad, x_bytes, weight_bytes,
                           budget, preferred_tb)
    B_pad = _round_up(B, TB)
    S_pad = _round_up(S, tS)

    # Zero padding is exact: zeros add nothing to the sum-over-S, padded weight
    # rows/cols are zero, and padded output rows/cols are sliced off below.
    x_p = x
    if (B_pad, S_pad, D_pad) != (B, S, D):
        x_p = jnp.pad(x, ((0, B_pad - B), (0, S_pad - S), (0, D_pad - D)))
    if stream_bf16:
        x_p = x_p.astype(jnp.bfloat16)
    w1_p = jnp.pad(w1, ((0, D_pad - D), (0, H_pad - H))) if (D_pad, H_pad) != (D, H) else w1
    b1_p = jnp.pad(b1, ((0, 0), (0, H_pad - H))) if H_pad != H else b1
    w2_p = jnp.pad(w2, ((0, H_pad - H), (0, O_pad - O))) if (H_pad, O_pad) != (H, O) else w2
    b2_p = jnp.pad(b2, ((0, 0), (0, O_pad - O))) if O_pad != O else b2

    grid = (B_pad // TB, S_pad // tS)

    est_vmem = (weight_bytes
                + 2 * TB * tS * D_pad * x_bytes
                + 2 * 4 * TB * (O_pad + D_pad)
                + 4 * TB * D_pad)
    vmem_limit = None
    if est_vmem > 12 * 1024 * 1024:   # below v5e's 16 MiB scoped default
        vmem_limit = int(min(max(est_vmem * 5 // 4, 32 * 1024 * 1024), budget))

    # Resident operands: constant index_map + single buffer (no double-buffer).
    resident = functools.partial(pl.BlockSpec, pipeline_mode=pl.Buffered(1))

    kernel = functools.partial(_workspace_kernel, inv_s=1.0 / S)

    out_p, xmean_p = pl.pallas_call(
        kernel,
        out_shape=(jax.ShapeDtypeStruct((B_pad, O_pad), jnp.float32),
                   jax.ShapeDtypeStruct((B_pad, D_pad), jnp.float32)),
        grid=grid,
        in_specs=[
            pl.BlockSpec((TB, tS, D_pad), lambda i, j: (i, j, 0)),  # x: streamed
            resident((D_pad, H_pad), lambda i, j: (0, 0)),          # w1: resident
            resident((1, H_pad), lambda i, j: (0, 0)),              # b1
            resident((H_pad, O_pad), lambda i, j: (0, 0)),          # w2
            resident((1, O_pad), lambda i, j: (0, 0)),              # b2
        ],
        out_specs=[
            pl.BlockSpec((TB, O_pad), lambda i, j: (i, 0)),
            pl.BlockSpec((TB, D_pad), lambda i, j: (i, 0)),
        ],
        scratch_shapes=[pltpu.VMEM((TB, D_pad), jnp.float32)],
        compiler_params=pltpu.CompilerParams(
            dimension_semantics=("parallel", "arbitrary"),
            vmem_limit_bytes=vmem_limit,
        ),
    )(x_p, w1_p, b1_p, w2_p, b2_p)

    return out_p[:B, :O], xmean_p[:B, :D]


def _reference(x, w1, b1, w2, b2):
    x_mean = jnp.mean(x, axis=1)
    hidden = jax.nn.relu(x_mean @ w1 + b1[0])
    return hidden @ w2 + b2[0], x_mean


if __name__ == "__main__":
    # Small shapes implied by the forward: x is (batch, seq, input_dim).
    B, S = 2, 8
    input_dim, hidden_dim, output_dim = 32, 32, 16

    key = jax.random.PRNGKey(0)
    kx, kw1, kb1, kw2, kb2, kx2 = jax.random.split(key, 6)

    x = jax.random.normal(kx, (B, S, input_dim), dtype=jnp.float32)

    # Deterministic parameter init (Linear weights stored as (in, out)).
    w1 = jax.random.normal(kw1, (input_dim, hidden_dim), jnp.float32) * 0.1
    b1 = jax.random.normal(kb1, (1, hidden_dim), jnp.float32) * 0.1
    w2 = jax.random.normal(kw2, (hidden_dim, output_dim), jnp.float32) * 0.1
    b2 = jax.random.normal(kb2, (1, output_dim), jnp.float32) * 0.1

    # --- Test 1: demo shapes (single batch block, single S chunk). ---
    output, x_mean = simple_workspace_forward(x, w1, b1, w2, b2)
    jax.block_until_ready((output, x_mean))
    out_ref, xmean_ref = _reference(x, w1, b1, w2, b2)
    assert jnp.allclose(x_mean, xmean_ref, atol=1e-5), "x_mean mismatch"
    assert jnp.allclose(output, out_ref, atol=1e-4), "output mismatch"

    # --- Test 2: exercise the multi-block batch + S-streaming accumulator
    # path by forcing a tiny VMEM budget (v7x-like constraint). ---
    x2 = jax.random.normal(kx2, (32, 64, input_dim), dtype=jnp.float32)
    output2, x_mean2 = simple_workspace_forward(
        x2, w1, b1, w2, b2, vmem_budget_bytes=256 * 1024)
    jax.block_until_ready((output2, x_mean2))
    out_ref2, xmean_ref2 = _reference(x2, w1, b1, w2, b2)
    assert jnp.allclose(x_mean2, xmean_ref2, atol=1e-5), "x_mean (streamed) mismatch"
    assert jnp.allclose(output2, out_ref2, atol=1e-4), "output (streamed) mismatch"

    print("KERNEL_OK")
</pallas_src>

<mosaic_0001>
module attributes {stable_mosaic.version = 11 : i64} {
  func.func @_workspace_kernel(%arg0: i32, %arg1: i32, %arg2: memref<2x8x128xf32, #tpu.memory_space<vmem>>, %arg3: memref<128x128xf32, #tpu.memory_space<vmem>>, %arg4: memref<1x128xf32, #tpu.memory_space<vmem>>, %arg5: memref<128x128xf32, #tpu.memory_space<vmem>>, %arg6: memref<1x128xf32, #tpu.memory_space<vmem>>, %arg7: memref<2x128xf32, #tpu.memory_space<vmem>>, %arg8: memref<2x128xf32, #tpu.memory_space<vmem>>, %arg9: memref<2x128xf32, #tpu.memory_space<vmem>>) attributes {dimension_semantics = [#tpu.dimension_semantics<parallel>, #tpu.dimension_semantics<arbitrary>], iteration_bounds = array<i64: 1, 1>, scalar_prefetch = 0 : i64, scratch_operands = 1 : i64, tpu.core_type = #tpu.core_type<tc>, window_params = [{transform_indices = @transform_0, window_bounds = array<i64: 2, 8, 128>}, {pipeline_mode = #tpu.pipeline_mode<synchronous>, transform_indices = @transform_1, window_bounds = array<i64: 128, 128>}, {pipeline_mode = #tpu.pipeline_mode<synchronous>, transform_indices = @transform_2, window_bounds = array<i64: 1, 128>}, {pipeline_mode = #tpu.pipeline_mode<synchronous>, transform_indices = @transform_3, window_bounds = array<i64: 128, 128>}, {pipeline_mode = #tpu.pipeline_mode<synchronous>, transform_indices = @transform_4, window_bounds = array<i64: 1, 128>}, {transform_indices = @transform_5, window_bounds = array<i64: 2, 128>}, {transform_indices = @transform_6, window_bounds = array<i64: 2, 128>}]} {
    %c0_i32 = arith.constant 0 : i32
    %0 = arith.cmpi eq, %arg1, %c0_i32 : i32
    %1 = arith.extui %0 : i1 to i32
    %c0_i32_0 = arith.constant 0 : i32
    %2 = arith.cmpi ne, %1, %c0_i32_0 : i32
    scf.if %2 {
      %cst_9 = arith.constant 0.000000e+00 : f32
      %11 = vector.broadcast %cst_9 : f32 to vector<2x128xf32>
      %c0_10 = arith.constant 0 : index
      %c0_11 = arith.constant 0 : index
      %12 = vector.load %arg9[%c0_10, %c0_11] : memref<2x128xf32, #tpu.memory_space<vmem>>, vector<2x128xf32>
      tpu.vector_store %arg9[%c0_10, %c0_11], %11 {strides = array<i32>} : memref<2x128xf32, #tpu.memory_space<vmem>>, vector<2x128xf32>,
    } else {
    }
    %c0 = arith.constant 0 : index
    %c0_1 = arith.constant 0 : index
    %c0_2 = arith.constant 0 : index
    %3 = vector.load %arg2[%c0, %c0_1, %c0_2] : memref<2x8x128xf32, #tpu.memory_space<vmem>>, vector<2x8x128xf32>
    %c0_3 = arith.constant 0 : index
    %c0_4 = arith.constant 0 : index
    %4 = vector.load %arg9[%c0_3, %c0_4] : memref<2x128xf32, #tpu.memory_space<vmem>>, vector<2x128xf32>
    %cst = arith.constant dense<0.000000e+00> : vector<2x128xf32>
    %5 = vector.multi_reduction <add>, %3, %cst [1] : vector<2x8x128xf32> to vector<2x128xf32>
    %6 = arith.addf %4, %5 : vector<2x128xf32>
    %c0_5 = arith.constant 0 : index
    %c0_6 = arith.constant 0 : index
    %7 = vector.load %arg9[%c0_5, %c0_6] : memref<2x128xf32, #tpu.memory_space<vmem>>, vector<2x128xf32>
    tpu.vector_store %arg9[%c0_5, %c0_6], %6 {strides = array<i32>} : memref<2x128xf32, #tpu.memory_space<vmem>>, vector<2x128xf32>,
    %c0_i32_7 = arith.constant 0 : i32
    %8 = arith.cmpi eq, %arg1, %c0_i32_7 : i32
    %9 = arith.extui %8 : i1 to i32
    %c0_i32_8 = arith.constant 0 : i32
    %10 = arith.cmpi ne, %9, %c0_i32_8 : i32
    scf.if %10 {
      %c0_9 = arith.constant 0 : index
      %c0_10 = arith.constant 0 : index
      %11 = vector.load %arg9[%c0_9, %c0_10] : memref<2x128xf32, #tpu.memory_space<vmem>>, vector<2x128xf32>
      %cst_11 = arith.constant 1.250000e-01 : f32
      %12 = vector.broadcast %cst_11 : f32 to vector<2x128xf32>
      %13 = arith.mulf %11, %12 : vector<2x128xf32>
      %c0_12 = arith.constant 0 : index
      %c0_13 = arith.constant 0 : index
      %14 = vector.load %arg8[%c0_12, %c0_13] : memref<2x128xf32, #tpu.memory_space<vmem>>, vector<2x128xf32>
      tpu.vector_store %arg8[%c0_12, %c0_13], %13 {strides = array<i32>} : memref<2x128xf32, #tpu.memory_space<vmem>>, vector<2x128xf32>,
      %c0_14 = arith.constant 0 : index
      %c0_15 = arith.constant 0 : index
      %15 = vector.load %arg3[%c0_14, %c0_15] : memref<128x128xf32, #tpu.memory_space<vmem>>, vector<128x128xf32>
      %cst_16 = arith.constant dense<0.000000e+00> : vector<2x128xf32>
      %16 = tpu.matmul %13, %15, %cst_16 {dimension_numbers = #tpu.dot_dimension_numbers<[1], [0], [0], [1], [0, 0, 1, 1], [], []>} : vector<2x128xf32>, vector<128x128xf32>, vector<2x128xf32> -> vector<2x128xf32>
      %c0_17 = arith.constant 0 : index
      %c0_18 = arith.constant 0 : index
      %17 = vector.load %arg4[%c0_17, %c0_18] : memref<1x128xf32, #tpu.memory_space<vmem>>, vector<1x128xf32>
      %18 = vector.broadcast %17 : vector<1x128xf32> to vector<2x128xf32>
      %19 = arith.addf %16, %18 : vector<2x128xf32>
      %cst_19 = arith.constant 0.000000e+00 : f32
      %20 = vector.broadcast %cst_19 : f32 to vector<2x128xf32>
      %21 = arith.maximumf %19, %20 : vector<2x128xf32>
      %c0_20 = arith.constant 0 : index
      %c0_21 = arith.constant 0 : index
      %22 = vector.load %arg5[%c0_20, %c0_21] : memref<128x128xf32, #tpu.memory_space<vmem>>, vector<128x128xf32>
      %cst_22 = arith.constant dense<0.000000e+00> : vector<2x128xf32>
      %23 = tpu.matmul %21, %22, %cst_22 {dimension_numbers = #tpu.dot_dimension_numbers<[1], [0], [0], [1], [0, 0, 1, 1], [], []>} : vector<2x128xf32>, vector<128x128xf32>, vector<2x128xf32> -> vector<2x128xf32>
      %c0_23 = arith.constant 0 : index
      %c0_24 = arith.constant 0 : index
      %24 = vector.load %arg6[%c0_23, %c0_24] : memref<1x128xf32, #tpu.memory_space<vmem>>, vector<1x128xf32>
      %25 = vector.broadcast %24 : vector<1x128xf32> to vector<2x128xf32>
      %26 = arith.addf %23, %25 : vector<2x128xf32>
      %c0_25 = arith.constant 0 : index
      %c0_26 = arith.constant 0 : index
      %27 = vector.load %arg7[%c0_25, %c0_26] : memref<2x128xf32, #tpu.memory_space<vmem>>, vector<2x128xf32>
      tpu.vector_store %arg7[%c0_25, %c0_26], %26 {strides = array<i32>} : memref<2x128xf32, #tpu.memory_space<vmem>>, vector<2x128xf32>,
    } else {
    }
    return
  }
  func.func @transform_0(%arg0: i32, %arg1: i32) -> (i32, i32, i32) {
    %c0_i32 = arith.constant 0 : i32
    %c0_i32_0 = arith.constant 0 : i32
    return %arg0, %arg1, %c0_i32 : i32, i32, i32
  }
  func.func @transform_1(%arg0: i32, %arg1: i32) -> (i32, i32) {
    %c0_i32 = arith.constant 0 : i32
    %c0_i32_0 = arith.constant 0 : i32
    %c0_i32_1 = arith.constant 0 : i32
    return %c0_i32, %c0_i32_0 : i32, i32
  }
  func.func @transform_2(%arg0: i32, %arg1: i32) -> (i32, i32) {
    %c0_i32 = arith.constant 0 : i32
    %c0_i32_0 = arith.constant 0 : i32
    %c0_i32_1 = arith.constant 0 : i32
    return %c0_i32, %c0_i32_0 : i32, i32
  }
  func.func @transform_3(%arg0: i32, %arg1: i32) -> (i32, i32) {
    %c0_i32 = arith.constant 0 : i32
    %c0_i32_0 = arith.constant 0 : i32
    %c0_i32_1 = arith.constant 0 : i32
    return %c0_i32, %c0_i32_0 : i32, i32
  }
  func.func @transform_4(%arg0: i32, %arg1: i32) -> (i32, i32) {
    %c0_i32 = arith.constant 0 : i32
    %c0_i32_0 = arith.constant 0 : i32
    %c0_i32_1 = arith.constant 0 : i32
    return %c0_i32, %c0_i32_0 : i32, i32
  }
  func.func @transform_5(%arg0: i32, %arg1: i32) -> (i32, i32) {
    %c0_i32 = arith.constant 0 : i32
    %c0_i32_0 = arith.constant 0 : i32
    return %arg0, %c0_i32 : i32, i32
  }
  func.func @transform_6(%arg0: i32, %arg1: i32) -> (i32, i32) {
    %c0_i32 = arith.constant 0 : i32
    %c0_i32_0 = arith.constant 0 : i32
    return %arg0, %c0_i32 : i32, i32
  }
}

</mosaic_0001>

<llo_original>
// kernel: tpu_custom_call.1
$region0: #{tpu_custom_call.1}
  #allocation0 [shape = 'u32[]', space=smem, size = 0x4, offset = 0x4, fixed_abs, tag = 'smem constant byte address 0x4 - core index']
  #allocation1 [shape = 'u32[72,128]{1,0:T(1,128)}', space=vmem, size = 0x9000, scoped, tag = 'internal scratch']
  #allocation2 [shape = 'f32[2,128]{1,0:T(2,128)}', space=vmem, size = 0x400, scoped, tag = 'scratch operand']
  %s0 = inlined_call_operand.hbm [shape: f32[2,8,128], index: 0, kind: input, shape index: {}]
  %s1 = inlined_call_operand.hbm [shape: f32[128,128], index: 1, kind: input, shape index: {}]
  %s2 = inlined_call_operand.vmem [shape: f32[1,128], index: 2, kind: input, shape index: {}]
  %s3 = inlined_call_operand.hbm [shape: f32[128,128], index: 3, kind: input, shape index: {}]
  %s4 = inlined_call_operand.vmem [shape: f32[1,128], index: 4, kind: input, shape index: {}]
  %s5 = inlined_call_operand.hbm [shape: f32[2,128], index: 5, kind: output, shape index: {0}]
  %s6 = inlined_call_operand.hbm [shape: f32[2,128], index: 6, kind: output, shape index: {1}]
  %7 = xla_tuple %s5, %s6
  %s8 = sld [smem:[#allocation0]]
  $region58: #{tpu_custom_call.1} parent=0
    _
  %s10 = ssub.s32 1, %s8
  %s11 = scalar_select 0, %s10, %s8
  $region1: #{tpu_custom_call.1} parent=0
    #allocation3 [shape = 'u8[8192]{0}', space=vmem, size = 0x2000, scoped, tag = 'input window, operand 0, single buffered']
    #allocation4 [shape = 's32[1]{0}', space=sflag, size = 0x4, scoped, tag = 'scoped memory for tpu_custom_call.1']
    #allocation5 [shape = 's32[1]{0}', space=sflag, size = 0x4, scoped, tag = 'scoped memory for tpu_custom_call.1']
    #allocation6 [shape = 'u8[65536]{0}', space=vmem, size = 0x10000, scoped, tag = 'input window, operand 1, single buffered']
    #allocation7 [shape = 's32[1]{0}', space=sflag, size = 0x4, scoped, tag = 'scoped memory for tpu_custom_call.1']
    #allocation8 [shape = 'u8[65536]{0}', space=vmem, size = 0x10000, scoped, tag = 'input window, operand 3, single buffered']
    #allocation9 [shape = 'u8[1024]{0}', space=vmem, size = 0x400, scoped, tag = 'output window, operand 0, single buffered']
    #allocation10 [shape = 'u8[1024]{0}', space=vmem, size = 0x400, scoped, tag = 'output window, operand 1, single buffered']
    #allocation11 [shape = 's32[1]{0}', space=sflag, size = 0x4, scoped, tag = 'scoped memory for tpu_custom_call.1']
    %12 = vsyncpa [#allocation4], 0
    %13 = vsyncpa [#allocation7], 0
    %14 = vsyncpa [#allocation5], 0
    %15 = vsyncpa [#allocation11], 0
    // Predicated region
    $region2: #{tpu_custom_call.1} parent=1 // pred_check
      _
    $region3: #{tpu_custom_call.1} parent=1 // pred_check_branch
      %17 = sbr.rel (0) target = $region5
    $region4: #{tpu_custom_call.1} parent=1 // pred_region
      %19 = vsyncadd [#allocation4], 0
      %s20 = sshll.u32 %s0, 4
      %s21 = int_to_ptr.hbm [resolvable:$true] %s20
      %s22 = sshll.u32 [#allocation3], 4
      %s23 = int_to_ptr.vmem [resolvable:$true] %s22
      %28 = dma.hbm_to_vmem [thread:$0]  %s21, 256, %s23, [#allocation4], 128, 128, 8
    $region5: #{tpu_custom_call.1} parent=1 // pred_fallthru
      _
    // Predicated region
    $region6: #{tpu_custom_call.1} parent=1 // pred_check
      _
    $region7: #{tpu_custom_call.1} parent=1 // pred_check_branch
      %30 = sbr.rel (0) target = $region9
    $region8: #{tpu_custom_call.1} parent=1 // pred_region
      %32 = vsyncadd [#allocation7], 0
      %s33 = sshll.u32 %s1, 4
      %s34 = int_to_ptr.hbm [resolvable:$true] %s33
      %s35 = sshll.u32 [#allocation6], 4
      %s36 = int_to_ptr.vmem [resolvable:$true] %s35
      %41 = dma.hbm_to_vmem [thread:$0]  %s34, 2048, %s36, [#allocation7], 128, 128, 8
    $region9: #{tpu_custom_call.1} parent=1 // pred_fallthru
      _
    // Predicated region
    $region10: #{tpu_custom_call.1} parent=1 // pred_check
      _
    $region11: #{tpu_custom_call.1} parent=1 // pred_check_branch
      %43 = sbr.rel (0) target = $region13
    $region12: #{tpu_custom_call.1} parent=1 // pred_region
      _
    $region13: #{tpu_custom_call.1} parent=1 // pred_fallthru
      _
    // Predicated region
    $region14: #{tpu_custom_call.1} parent=1 // pred_check
      _
    $region15: #{tpu_custom_call.1} parent=1 // pred_check_branch
      %45 = sbr.rel (0) target = $region17
    $region16: #{tpu_custom_call.1} parent=1 // pred_region
      %47 = vsyncadd [#allocation7], 0
      %s48 = sshll.u32 %s3, 4
      %s49 = int_to_ptr.hbm [resolvable:$true] %s48
      %s50 = sshll.u32 [#allocation8], 4
      %s51 = int_to_ptr.vmem [resolvable:$true] %s50
      %56 = dma.hbm_to_vmem [thread:$0]  %s49, 2048, %s51, [#allocation7], 128, 128, 8
    $region17: #{tpu_custom_call.1} parent=1 // pred_fallthru
      _
    // Predicated region
    $region18: #{tpu_custom_call.1} parent=1 // pred_check
      _
    $region19: #{tpu_custom_call.1} parent=1 // pred_check_branch
      %58 = sbr.rel (0) target = $region21
    $region20: #{tpu_custom_call.1} parent=1 // pred_region
      _
    $region21: #{tpu_custom_call.1} parent=1 // pred_fallthru
      _
    // Predicated region
    $region22: #{tpu_custom_call.1} parent=1 // pred_check
      _
    $region23: #{tpu_custom_call.1} parent=1 // pred_check_branch
      %60 = sbr.rel (0) target = $region25
    $region24: #{tpu_custom_call.1} parent=1 // pred_region
      %62 = dma.done [#allocation4], 256
    $region25: #{tpu_custom_call.1} parent=1 // pred_fallthru
      _
    // Predicated region
    $region26: #{tpu_custom_call.1} parent=1 // pred_check
      _
    $region27: #{tpu_custom_call.1} parent=1 // pred_check_branch
      %64 = sbr.rel (0) target = $region29
    $region28: #{tpu_custom_call.1} parent=1 // pred_region
      %66 = dma.done [#allocation7], 2048
    $region29: #{tpu_custom_call.1} parent=1 // pred_fallthru
      _
    // Predicated region
    $region30: #{tpu_custom_call.1} parent=1 // pred_check
      _
    $region31: #{tpu_custom_call.1} parent=1 // pred_check_branch
      %68 = sbr.rel (0) target = $region33
    $region32: #{tpu_custom_call.1} parent=1 // pred_region
      %70 = dma.done [#allocation7], 2048
    $region33: #{tpu_custom_call.1} parent=1 // pred_fallthru
      _
    %p71 = scmp.eq.s32.totalorder 0, 0
    // Predicated region
    $region34: #{tpu_custom_call.1} parent=1 // pred_check
      %p72 = pneg %p71
    $region35: #{tpu_custom_call.1} parent=1 // pred_check_branch
      %74 = sbr.rel (%p72) target = $region37
    $region36: #{tpu_custom_call.1} parent=1 // pred_region
      %75 = vst [vmem:[#allocation2] sm:$0x3] 0.0
    $region37: #{tpu_custom_call.1} parent=1 // pred_fallthru
      _
    %v76 = vld [vmem:[#allocation3] sm:$0xff]
    %v77 = vld [vmem:[#allocation3 + $0x8] sm:$0xff]
    %v78 = vld [vmem:[#allocation2] sm:$0x3]
    %v79 = vrot.slane %v76, 4
    %v80 = vadd.f32 %v76, %v79
    %v81 = vrot.slane %v80, 2
    %v82 = vadd.f32 %v80, %v81
    %v83 = vrot.slane %v82, 1
    %v84 = vadd.f32 %v82, %v83
    %v85 = vrot.slane %v77, 4
    %v86 = vadd.f32 %v77, %v85
    %v87 = vrot.slane %v86, 2
    %v88 = vadd.f32 %v86, %v87
    %v89 = vrot.slane %v88, 1
    %v90 = vadd.f32 %v88, %v89
    %vm93 = vcmask 1041409
    %v94 = vsel %vm93, %v90, %v84
    %v96 = vadd.f32 %v78, %v94
    %97 = vst [vmem:[#allocation2] sm:$0x3] %v96
    // Predicated region
    $region38: #{tpu_custom_call.1} parent=1 // pred_check
      %p98 = pneg %p71
    $region39: #{tpu_custom_call.1} parent=1 // pred_check_branch
      %100 = sbr.rel (%p98) target = $region41
    $region40: #{tpu_custom_call.1} parent=1 // pred_region
      %v101 = vld [vmem:[#allocation2] sm:$0x3]
      %v102 = vmul.f32 %v101, 0.125
      %103 = vst [vmem:[#allocation10] sm:$0x3] %v102
      %v104 = vld [vmem:[#allocation6] sm:$0xff]
      %v105 = vld [vmem:[#allocation6 + $0x8] sm:$0xff]
      %v106 = vld [vmem:[#allocation6 + $0x10] sm:$0xff]
      %v107 = vld [vmem:[#allocation6 + $0x18] sm:$0xff]
      %v108 = vld [vmem:[#allocation6 + $0x20] sm:$0xff]
      %v109 = vld [vmem:[#allocation6 + $0x28] sm:$0xff]
      %v110 = vld [vmem:[#allocation6 + $0x30] sm:$0xff]
      %v111 = vld [vmem:[#allocation6 + $0x38] sm:$0xff]
      %v112 = vld [vmem:[#allocation6 + $0x40] sm:$0xff]
      %v113 = vld [vmem:[#allocation6 + $0x48] sm:$0xff]
      %v114 = vld [vmem:[#allocation6 + $0x50] sm:$0xff]
      %v115 = vld [vmem:[#allocation6 + $0x58] sm:$0xff]
      %v116 = vld [vmem:[#allocation6 + $0x60] sm:$0xff]
      %v117 = vld [vmem:[#allocation6 + $0x68] sm:$0xff]
      %v118 = vld [vmem:[#allocation6 + $0x70] sm:$0xff]
      %v119 = vld [vmem:[#allocation6 + $0x78] sm:$0xff]
      %v120 = vld [vmem:[%s2] sm:$0x1]
      %v122 = vperm.slane %v120, 0
      %124 = vmatpush.msra.mxu0 %v119
      %125 = vmatpush.msra.mxu0 %v118
      %126 = vmatpush.msra.mxu0 %v117
      %127 = vmatpush.msra.mxu0 %v116
      %128 = vmatpush.msra.mxu0 %v115
      %129 = vmatpush.msra.mxu0 %v114
      %130 = vmatpush.msra.mxu0 %v113
      %131 = vmatpush.msra.mxu0 %v112
      %132 = vmatpush.msra.mxu0 %v111
      %133 = vmatpush.msra.mxu0 %v110
      %134 = vmatpush.msra.mxu0 %v109
      %135 = vmatpush.msra.mxu0 %v108
      %136 = vmatpush.msra.mxu0 %v107
      %137 = vmatpush.msra.mxu0 %v106
      %138 = vmatpush.msra.mxu0 %v105
      %139 = vmatpush.msra.mxu0 %v104
      %140 = vmatmul.f32.gmra.mxu0 %v102
      %v141 = vpop.f32.mrf.mxu0
      %v142 = vadd.f32 %v122, %v141
      %143 = vdwg.mxu0
      %v144 = vmax.f32 %v142, 0.0
      %v145 = vld [vmem:[#allocation8] sm:$0xff]
      %v146 = vld [vmem:[#allocation8 + $0x8] sm:$0xff]
      %v147 = vld [vmem:[#allocation8 + $0x10] sm:$0xff]
      %v148 = vld [vmem:[#allocation8 + $0x18] sm:$0xff]
      %v149 = vld [vmem:[#allocation8 + $0x20] sm:$0xff]
      %v150 = vld [vmem:[#allocation8 + $0x28] sm:$0xff]
      %v151 = vld [vmem:[#allocation8 + $0x30] sm:$0xff]
      %v152 = vld [vmem:[#allocation8 + $0x38] sm:$0xff]
      %v153 = vld [vmem:[#allocation8 + $0x40] sm:$0xff]
      %v154 = vld [vmem:[#allocation8 + $0x48] sm:$0xff]
      %v155 = vld [vmem:[#allocation8 + $0x50] sm:$0xff]
      %v156 = vld [vmem:[#allocation8 + $0x58] sm:$0xff]
      %v157 = vld [vmem:[#allocation8 + $0x60] sm:$0xff]
      %v158 = vld [vmem:[#allocation8 + $0x68] sm:$0xff]
      %v159 = vld [vmem:[#allocation8 + $0x70] sm:$0xff]
      %v160 = vld [vmem:[#allocation8 + $0x78] sm:$0xff]
      %v161 = vld [vmem:[%s4] sm:$0x1]
      %v163 = vperm.slane %v161, 0
      %165 = vmatpush.msra.mxu0 %v160
      %166 = vmatpush.msra.mxu0 %v159
      %167 = vmatpush.msra.mxu0 %v158
      %168 = vmatpush.msra.mxu0 %v157
      %169 = vmatpush.msra.mxu0 %v156
      %170 = vmatpush.msra.mxu0 %v155
      %171 = vmatpush.msra.mxu0 %v154
      %172 = vmatpush.msra.mxu0 %v153
      %173 = vmatpush.msra.mxu0 %v152
      %174 = vmatpush.msra.mxu0 %v151
      %175 = vmatpush.msra.mxu0 %v150
      %176 = vmatpush.msra.mxu0 %v149
      %177 = vmatpush.msra.mxu0 %v148
      %178 = vmatpush.msra.mxu0 %v147
      %179 = vmatpush.msra.mxu0 %v146
      %180 = vmatpush.msra.mxu0 %v145
      %181 = vmatmul.f32.gmra.mxu0 %v144
      %v182 = vpop.f32.mrf.mxu0
      %v183 = vadd.f32 %v163, %v182
      %184 = vdwg.mxu0
      %185 = vst [vmem:[#allocation9] sm:$0x3] %v183
    $region41: #{tpu_custom_call.1} parent=1 // pred_fallthru
      _
    // Predicated region
    $region42: #{tpu_custom_call.1} parent=1 // pred_check
      _
    $region43: #{tpu_custom_call.1} parent=1 // pred_check_branch
      %187 = sbr.rel (0) target = $region45
    $region44: #{tpu_custom_call.1} parent=1 // pred_region
      %189 = vsyncadd [#allocation5], 0
      %s191 = sshll.u32 [#allocation9], 4
      %s192 = int_to_ptr.vmem [resolvable:$true] %s191
      %s193 = sshll.u32 %s5, 4
      %s194 = int_to_ptr.hbm [resolvable:$true] %s193
      %196 = dma.vmem_to_hbm [thread:$0]  %s192, 32, %s194, [#allocation5]
    $region45: #{tpu_custom_call.1} parent=1 // pred_fallthru
      _
    // Predicated region
    $region46: #{tpu_custom_call.1} parent=1 // pred_check
      _
    $region47: #{tpu_custom_call.1} parent=1 // pred_check_branch
      %198 = sbr.rel (0) target = $region49
    $region48: #{tpu_custom_call.1} parent=1 // pred_region
      %200 = vsyncadd [#allocation11], 0
      %s202 = sshll.u32 [#allocation10], 4
      %s203 = int_to_ptr.vmem [resolvable:$true] %s202
      %s204 = sshll.u32 %s6, 4
      %s205 = int_to_ptr.hbm [resolvable:$true] %s204
      %207 = dma.vmem_to_hbm [thread:$0]  %s203, 32, %s205, [#allocation11]
    $region49: #{tpu_custom_call.1} parent=1 // pred_fallthru
      _
    // Predicated region
    $region50: #{tpu_custom_call.1} parent=1 // pred_check
      _
    $region51: #{tpu_custom_call.1} parent=1 // pred_check_branch
      %209 = sbr.rel (0) target = $region53
    $region52: #{tpu_custom_call.1} parent=1 // pred_region
      %211 = dma.done [#allocation5], 32
    $region53: #{tpu_custom_call.1} parent=1 // pred_fallthru
      _
    // Predicated region
    $region54: #{tpu_custom_call.1} parent=1 // pred_check
      _
    $region55: #{tpu_custom_call.1} parent=1 // pred_check_branch
      %213 = sbr.rel (0) target = $region57
    $region56: #{tpu_custom_call.1} parent=1 // pred_region
      %215 = dma.done [#allocation11], 32
    $region57: #{tpu_custom_call.1} parent=1 // pred_fallthru
      _
    %216 = vsyncpa [#allocation4], 1
    %217 = vsyncpa [#allocation7], 1
    %218 = vsyncpa [#allocation5], 1
    %219 = vsyncpa [#allocation11], 1

</llo_original>
